<compile_context>
chip_gen: v5e
topology: v5e:2x2
jax: 0.10.0
libtpu: 0.0.40
codegen_flags: <defaults>
</compile_context>

<pallas_src>
import functools

import jax
import jax.numpy as jnp
from jax.experimental import pallas as pl
from jax.experimental.pallas import tpu as pltpu


def _vmem_limit_bytes() -> int:
    """Generation-aware scoped-VMEM limit."""
    cap = None
    try:
        cap = getattr(pltpu.get_tpu_info(), "vmem_capacity_bytes", None)
    except Exception:
        cap = None
    if cap is None:
        cap = 64 * 1024 * 1024                       # conservative (v7x per-TC)
    if cap >= 128 * 1024 * 1024:                     # v5e / v6e: 128 MiB physical
        return 96 * 1024 * 1024
    return 32 * 1024 * 1024                          # v7x: 64 MiB physical per TC


def _choose_tile_hw(hw: int, c: int, itemsize: int, budget_bytes: int) -> int:
    """Lane-dense HW tile sized by a VMEM budget.

    Returns either the full extent (hw) or a multiple of 128 < hw; the grid then
    uses cdiv(hw, T) with a (masked) partial last tile.
    """
    max_lanes = max(128, budget_bytes // max(1, c * itemsize))
    t = (max_lanes // 128) * 128
    if t >= hw:
        return hw                                    # single full-extent block
    return t


# --------------------------------------------------------------------------- #
# Fused single-pass path: grid = (N,), block (1, C, HW).
#   pool -> 1x1 conv -> ReLU -> 1x1 conv -> sigmoid -> sSE -> fused apply.
# --------------------------------------------------------------------------- #
def scse_fused_kernel(x_ref, w1_ref, b1_ref, w2_ref, b2_ref, ws_ref, bs_ref,
                      o_ref, *, inv_hw):
    xf = x_ref[0].astype(jnp.float32)                            # (C, HW)

    # cSE gate: global average pool over HW, then the tiny MLP.
    pooled = jnp.sum(xf, axis=1, keepdims=True) * inv_hw         # (C, 1)
    z = jnp.dot(w1_ref[...], pooled,
                preferred_element_type=jnp.float32) + b1_ref[...]   # (mid, 1)
    z = jnp.maximum(z, 0.0)                                      # ReLU
    s = jnp.dot(w2_ref[...], z,
                preferred_element_type=jnp.float32) + b2_ref[...]   # (C, 1)
    cse = jax.nn.sigmoid(s)                                      # (C, 1)

    # sSE 1x1 conv (C -> 1): VPU broadcast-mul + sublane reduce.
    sp = jnp.sum(xf * ws_ref[...].astype(jnp.float32),
                 axis=0, keepdims=True) + bs_ref[0]              # (1, HW)
    sse = jax.nn.sigmoid(sp)

    # Fused epilogue: x*cse + x*sse == x*(cse + sse).
    o_ref[0] = (xf * (cse + sse)).astype(o_ref.dtype)


# --------------------------------------------------------------------------- #
# Two-pass fallback, pass 1: per-(n) channel sums.  grid = (N, cdiv(HW, T1)).
#   Output block is resident across the (arbitrary) HW axis -> accumulate in it.
# --------------------------------------------------------------------------- #
def pool_sums_kernel(x_ref, sums_ref, *, t, hw, needs_mask):
    h = pl.program_id(1)

    @pl.when(h == 0)
    def _():
        sums_ref[...] = jnp.zeros_like(sums_ref)

    xt = x_ref[0].astype(jnp.float32)                            # (C, T)
    if needs_mask:
        lane = jax.lax.broadcasted_iota(jnp.int32, xt.shape, 1)
        xt = jnp.where(h * t + lane < hw, xt, 0.0)               # mask ragged tail
    sums_ref[0] += jnp.sum(xt, axis=1, keepdims=True)            # (C, 1) f32 accum


# --------------------------------------------------------------------------- #
# Two-pass fallback, pass 2: sSE + fused gating.  grid = (N, cdiv(HW, T2)),
# both axes parallel; ragged tail handled by masked stores.
# --------------------------------------------------------------------------- #
def scse_apply_kernel(x_ref, gate_ref, ws_ref, bs_ref, o_ref):
    x = x_ref[0].astype(jnp.float32)                             # (C, T)
    cse = gate_ref[0]                                            # (C, 1) f32
    ws = ws_ref[...].astype(jnp.float32)                         # (C, 1)

    sp = jnp.sum(x * ws, axis=0, keepdims=True) + bs_ref[0]      # (1, T)
    sse = jax.nn.sigmoid(sp)

    o_ref[0] = (x * (cse + sse)).astype(o_ref.dtype)


def scse_pallas(x_nchw, w1, b1, w2, b2, ws, bs, *,
                force_two_pass: bool = False, max_tile_hw: int | None = None):
    N, C, H, W = x_nchw.shape
    HW = H * W
    mid = w1.shape[0]
    assert mid >= 1, "in_channels // reduction must be >= 1 (got mid=0)"

    x = x_nchw.reshape(N, C, HW)
    itemsize = x.dtype.itemsize
    vmem_limit = _vmem_limit_bytes()

    # Small operands in kernel-friendly layouts.
    ws_col = ws.reshape(1, C).T.astype(jnp.float32)              # (C, 1)
    bs_smem = bs.reshape(1).astype(jnp.float32)                  # scalar in SMEM
    b1c = b1.reshape(mid, 1).astype(jnp.float32)
    b2c = b2.reshape(C, 1).astype(jnp.float32)

    # ---------------- fused single-pass fast path ---------------- #
    slab = C * HW
    # in/out double buffers + f32 working copies + weights/headroom.
    fused_bytes = 4 * slab * itemsize + 2 * slab * 4 + 512 * 1024
    if (not force_two_pass) and fused_bytes <= int(0.85 * vmem_limit):
        out = pl.pallas_call(
            functools.partial(scse_fused_kernel, inv_hw=1.0 / HW),
            out_shape=jax.ShapeDtypeStruct((N, C, HW), x.dtype),
            grid_spec=pltpu.PrefetchScalarGridSpec(
                num_scalar_prefetch=0,
                grid=(N,),
                in_specs=[
                    pl.BlockSpec((1, C, HW), lambda n: (n, 0, 0)),   # x slab
                    pl.BlockSpec((mid, C), lambda n: (0, 0)),        # cSE conv1 W
                    pl.BlockSpec((mid, 1), lambda n: (0, 0)),        # cSE conv1 b
                    pl.BlockSpec((C, mid), lambda n: (0, 0)),        # cSE conv2 W
                    pl.BlockSpec((C, 1), lambda n: (0, 0)),          # cSE conv2 b
                    pl.BlockSpec((C, 1), lambda n: (0, 0)),          # sSE weight col
                    pl.BlockSpec(memory_space=pltpu.MemorySpace.SMEM),  # sSE bias
                ],
                out_specs=pl.BlockSpec((1, C, HW), lambda n: (n, 0, 0)),
            ),
            compiler_params=pltpu.CompilerParams(
                dimension_semantics=("parallel",),
                vmem_limit_bytes=vmem_limit),
        )(x, w1, b1c, w2, b2c, ws_col, bs_smem)
        return out.reshape(N, C, H, W)

    # ---------------- two-pass fallback ---------------- #
    # Pass 1 only double-buffers the input; pass 2 double-buffers input + output.
    t1 = _choose_tile_hw(HW, C, itemsize, vmem_limit // 3)
    t2 = _choose_tile_hw(HW, C, itemsize, vmem_limit // 6)
    if max_tile_hw is not None:                     # testing knob
        cap = max(128, (max_tile_hw // 128) * 128)
        if cap < HW:
            t1 = min(t1, cap)
            t2 = min(t2, cap)
    n_h1 = pl.cdiv(HW, t1)
    n_h2 = pl.cdiv(HW, t2)

    # Pass 1: per-(n) channel sums (streaming reduction, no weights in kernel).
    sums = pl.pallas_call(
        functools.partial(pool_sums_kernel, t=t1, hw=HW,
                          needs_mask=(HW % t1 != 0)),
        out_shape=jax.ShapeDtypeStruct((N, C, 1), jnp.float32),
        grid_spec=pltpu.PrefetchScalarGridSpec(
            num_scalar_prefetch=0,
            grid=(N, n_h1),
            in_specs=[pl.BlockSpec((1, C, t1), lambda n, h: (n, 0, h))],
            out_specs=pl.BlockSpec((1, C, 1), lambda n, h: (n, 0, 0)),
        ),
        compiler_params=pltpu.CompilerParams(
            dimension_semantics=("parallel", "arbitrary"),
            vmem_limit_bytes=vmem_limit),
    )(x)

    # Tiny cSE MLP in plain JAX between the passes (microscopic FLOPs).
    pooled = sums[:, :, 0] * (1.0 / HW)                          # (N, C) f32
    z = jnp.maximum(pooled @ w1.astype(jnp.float32).T + b1c[:, 0], 0.0)
    gate = jax.nn.sigmoid(z @ w2.astype(jnp.float32).T + b2c[:, 0])   # (N, C)
    gate = gate[:, :, None]                                      # (N, C, 1) f32

    # Pass 2: elementwise apply, grid fully parallel, lane-dense tiles.
    out = pl.pallas_call(
        scse_apply_kernel,
        out_shape=jax.ShapeDtypeStruct((N, C, HW), x.dtype),
        grid_spec=pltpu.PrefetchScalarGridSpec(
            num_scalar_prefetch=0,
            grid=(N, n_h2),
            in_specs=[
                pl.BlockSpec((1, C, t2), lambda n, h: (n, 0, h)),    # x tile
                pl.BlockSpec((1, C, 1), lambda n, h: (n, 0, 0)),     # cSE gate
                pl.BlockSpec((C, 1), lambda n, h: (0, 0)),           # sSE weight col
                pl.BlockSpec(memory_space=pltpu.MemorySpace.SMEM),   # sSE bias
            ],
            out_specs=pl.BlockSpec((1, C, t2), lambda n, h: (n, 0, h)),
        ),
        compiler_params=pltpu.CompilerParams(
            dimension_semantics=("parallel", "parallel"),
            vmem_limit_bytes=vmem_limit),
    )(x, gate, ws_col, bs_smem)

    return out.reshape(N, C, H, W)


def scse_ref(x, w1, b1, w2, b2, ws, bs):
    """Pure-JAX reference matching the PyTorch forward semantics."""
    pooled = x.mean(axis=(2, 3))                                        # (N, C)
    z = jnp.maximum(pooled @ w1.T + b1[:, 0], 0.0)                      # (N, mid)
    s = jax.nn.sigmoid(z @ w2.T + b2[:, 0])                             # (N, C)
    sp = jax.nn.sigmoid(jnp.einsum('nchw,oc->nohw', x, ws) + bs[0, 0])  # (N,1,H,W)
    return x * s[:, :, None, None] + x * sp


def _make_params(key, C, mid):
    k1, k2, k3, k4, k5, k6 = jax.random.split(key, 6)
    w1 = jax.random.normal(k1, (mid, C), dtype=jnp.float32) * 0.1   # cSE conv1
    b1 = jax.random.normal(k2, (mid, 1), dtype=jnp.float32) * 0.1
    w2 = jax.random.normal(k3, (C, mid), dtype=jnp.float32) * 0.1   # cSE conv2
    b2 = jax.random.normal(k4, (C, 1), dtype=jnp.float32) * 0.1
    w_s = jax.random.normal(k5, (1, C), dtype=jnp.float32) * 0.1    # sSE conv
    b_s = jax.random.normal(k6, (1, 1), dtype=jnp.float32) * 0.1
    return w1, b1, w2, b2, w_s, b_s


if __name__ == "__main__":
    # Module config: in_channels=32, reduction=16 -> mid channels = 2
    C, reduction = 32, 16
    mid = C // reduction

    key = jax.random.PRNGKey(0)
    kp, kx1, kx2 = jax.random.split(key, 3)
    w1, b1, w2, b2, w_s, b_s = _make_params(kp, C, mid)

    # Test A: small slab -> fused single-pass fast path.
    x_a = jax.random.normal(kx1, (2, C, 16, 16), dtype=jnp.float32)
    out_a = jax.block_until_ready(scse_pallas(x_a, w1, b1, w2, b2, w_s, b_s))
    ref_a = scse_ref(x_a, w1, b1, w2, b2, w_s, b_s)
    assert out_a.shape == x_a.shape
    assert jnp.allclose(out_a, ref_a, atol=1e-5, rtol=1e-5), "fused path mismatch"

    # Test B: same inputs, forced two-pass path with 128-lane tiles (exercises the
    # streaming reduction + parallel apply pipeline).
    out_b = jax.block_until_ready(
        scse_pallas(x_a, w1, b1, w2, b2, w_s, b_s,
                    force_two_pass=True, max_tile_hw=128))
    assert jnp.allclose(out_b, ref_a, atol=1e-5, rtol=1e-5), "two-pass mismatch"

    # Test C: non-128-multiple spatial extent (HW = 225) -> ragged last tile,
    # both the fused full-extent block and the masked two-pass path.
    x_c = jax.random.normal(kx2, (2, C, 15, 15), dtype=jnp.float32)
    ref_c = scse_ref(x_c, w1, b1, w2, b2, w_s, b_s)
    out_c1 = jax.block_until_ready(scse_pallas(x_c, w1, b1, w2, b2, w_s, b_s))
    assert jnp.allclose(out_c1, ref_c, atol=1e-5, rtol=1e-5), "fused ragged mismatch"
    out_c2 = jax.block_until_ready(
        scse_pallas(x_c, w1, b1, w2, b2, w_s, b_s,
                    force_two_pass=True, max_tile_hw=128))
    assert jnp.allclose(out_c2, ref_c, atol=1e-5, rtol=1e-5), "two-pass ragged mismatch"

    print("KERNEL_OK")
</pallas_src>

<mosaic_0001>
module attributes {stable_mosaic.version = 11 : i64} {
  func.func @scse_fused_kernel(%arg0: i32, %arg1: memref<1x32x256xf32, #tpu.memory_space<vmem>>, %arg2: memref<2x32xf32, #tpu.memory_space<vmem>>, %arg3: memref<2x1xf32, #tpu.memory_space<vmem>>, %arg4: memref<32x2xf32, #tpu.memory_space<vmem>>, %arg5: memref<32x1xf32, #tpu.memory_space<vmem>>, %arg6: memref<32x1xf32, #tpu.memory_space<vmem>>, %arg7: memref<1xf32, #tpu.memory_space<smem>>, %arg8: memref<1x32x256xf32, #tpu.memory_space<vmem>>) attributes {dimension_semantics = [#tpu.dimension_semantics<parallel>], iteration_bounds = array<i64: 2>, scalar_prefetch = 0 : i64, scratch_operands = 0 : i64, tpu.core_type = #tpu.core_type<tc>, window_params = [{transform_indices = @transform_0, window_bounds = array<i64: 1, 32, 256>}, {pipeline_mode = #tpu.pipeline_mode<synchronous>, transform_indices = @transform_1, window_bounds = array<i64: 2, 32>}, {pipeline_mode = #tpu.pipeline_mode<synchronous>, transform_indices = @transform_2, window_bounds = array<i64: 2, 1>}, {pipeline_mode = #tpu.pipeline_mode<synchronous>, transform_indices = @transform_3, window_bounds = array<i64: 32, 2>}, {pipeline_mode = #tpu.pipeline_mode<synchronous>, transform_indices = @transform_4, window_bounds = array<i64: 32, 1>}, {pipeline_mode = #tpu.pipeline_mode<synchronous>, transform_indices = @transform_5, window_bounds = array<i64: 32, 1>}, {transform_indices = @transform_6, window_bounds = array<i64: 1>}, {transform_indices = @transform_7, window_bounds = array<i64: 1, 32, 256>}]} {
    %c0 = arith.constant 0 : index
    %c0_0 = arith.constant 0 : index
    %c0_1 = arith.constant 0 : index
    %0 = vector.load %arg1[%c0, %c0_0, %c0_1] : memref<1x32x256xf32, #tpu.memory_space<vmem>>, vector<1x32x256xf32>
    %1 = vector.shape_cast %0 : vector<1x32x256xf32> to vector<32x256xf32>
    %cst = arith.constant dense<0.000000e+00> : vector<32xf32>
    %2 = vector.multi_reduction <add>, %1, %cst [1] : vector<32x256xf32> to vector<32xf32>
    %3 = vector.shape_cast %2 : vector<32xf32> to vector<32x1xf32>
    %cst_2 = arith.constant 3.906250e-03 : f32
    %4 = vector.broadcast %cst_2 : f32 to vector<32x1xf32>
    %5 = arith.mulf %3, %4 : vector<32x1xf32>
    %c0_3 = arith.constant 0 : index
    %c0_4 = arith.constant 0 : index
    %6 = vector.load %arg2[%c0_3, %c0_4] : memref<2x32xf32, #tpu.memory_space<vmem>>, vector<2x32xf32>
    %cst_5 = arith.constant dense<0.000000e+00> : vector<2x1xf32>
    %7 = tpu.matmul %6, %5, %cst_5 {dimension_numbers = #tpu.dot_dimension_numbers<[1], [0], [0], [1], [0, 0, 1, 1], [], []>} : vector<2x32xf32>, vector<32x1xf32>, vector<2x1xf32> -> vector<2x1xf32>
    %c0_6 = arith.constant 0 : index
    %c0_7 = arith.constant 0 : index
    %8 = vector.load %arg3[%c0_6, %c0_7] : memref<2x1xf32, #tpu.memory_space<vmem>>, vector<2x1xf32>
    %9 = arith.addf %7, %8 : vector<2x1xf32>
    %cst_8 = arith.constant 0.000000e+00 : f32
    %10 = vector.broadcast %cst_8 : f32 to vector<2x1xf32>
    %11 = arith.maximumf %9, %10 : vector<2x1xf32>
    %c0_9 = arith.constant 0 : index
    %c0_10 = arith.constant 0 : index
    %12 = vector.load %arg4[%c0_9, %c0_10] : memref<32x2xf32, #tpu.memory_space<vmem>>, vector<32x2xf32>
    %cst_11 = arith.constant dense<0.000000e+00> : vector<32x1xf32>
    %13 = tpu.matmul %12, %11, %cst_11 {dimension_numbers = #tpu.dot_dimension_numbers<[1], [0], [0], [1], [0, 0, 1, 1], [], []>} : vector<32x2xf32>, vector<2x1xf32>, vector<32x1xf32> -> vector<32x1xf32>
    %c0_12 = arith.constant 0 : index
    %c0_13 = arith.constant 0 : index
    %14 = vector.load %arg5[%c0_12, %c0_13] : memref<32x1xf32, #tpu.memory_space<vmem>>, vector<32x1xf32>
    %15 = arith.addf %13, %14 : vector<32x1xf32>
    %16 = arith.negf %15 : vector<32x1xf32>
    %17 = math.exp %16 : vector<32x1xf32>
    %cst_14 = arith.constant 1.000000e+00 : f32
    %18 = vector.broadcast %cst_14 : f32 to vector<32x1xf32>
    %19 = arith.addf %18, %17 : vector<32x1xf32>
    %20 = arith.divf %18, %19 : vector<32x1xf32>
    %c0_15 = arith.constant 0 : index
    %c0_16 = arith.constant 0 : index
    %21 = vector.load %arg6[%c0_15, %c0_16] : memref<32x1xf32, #tpu.memory_space<vmem>>, vector<32x1xf32>
    %22 = vector.broadcast %21 : vector<32x1xf32> to vector<32x256xf32>
    %23 = arith.mulf %1, %22 : vector<32x256xf32>
    %cst_17 = arith.constant dense<0.000000e+00> : vector<256xf32>
    %24 = vector.multi_reduction <add>, %23, %cst_17 [0] : vector<32x256xf32> to vector<256xf32>
    %25 = vector.shape_cast %24 : vector<256xf32> to vector<1x256xf32>
    %c0_18 = arith.constant 0 : index
    %26 = memref.load %arg7[%c0_18] : memref<1xf32, #tpu.memory_space<smem>>
    %27 = vector.broadcast %26 : f32 to vector<1x256xf32>
    %28 = arith.addf %25, %27 : vector<1x256xf32>
    %29 = arith.negf %28 : vector<1x256xf32>
    %30 = math.exp %29 : vector<1x256xf32>
    %cst_19 = arith.constant 1.000000e+00 : f32
    %31 = vector.broadcast %cst_19 : f32 to vector<1x256xf32>
    %32 = arith.addf %31, %30 : vector<1x256xf32>
    %33 = arith.divf %31, %32 : vector<1x256xf32>
    %34 = vector.broadcast %20 : vector<32x1xf32> to vector<32x256xf32>
    %35 = vector.broadcast %33 : vector<1x256xf32> to vector<32x256xf32>
    %36 = arith.addf %34, %35 : vector<32x256xf32>
    %37 = arith.mulf %1, %36 : vector<32x256xf32>
    %c0_20 = arith.constant 0 : index
    %c0_21 = arith.constant 0 : index
    %c0_22 = arith.constant 0 : index
    %38 = vector.load %arg8[%c0_20, %c0_21, %c0_22] : memref<1x32x256xf32, #tpu.memory_space<vmem>>, vector<1x32x256xf32>
    %39 = vector.shape_cast %38 : vector<1x32x256xf32> to vector<32x256xf32>
    %40 = vector.shape_cast %37 : vector<32x256xf32> to vector<1x32x256xf32>
    tpu.vector_store %arg8[%c0_20, %c0_21, %c0_22], %40 {strides = array<i32>} : memref<1x32x256xf32, #tpu.memory_space<vmem>>, vector<1x32x256xf32>,
    return
  }
  func.func @transform_0(%arg0: i32) -> (i32, i32, i32) {
    %c0_i32 = arith.constant 0 : i32
    %c0_i32_0 = arith.constant 0 : i32
    %c0_i32_1 = arith.constant 0 : i32
    return %arg0, %c0_i32, %c0_i32_0 : i32, i32, i32
  }
  func.func @transform_1(%arg0: i32) -> (i32, i32) {
    %c0_i32 = arith.constant 0 : i32
    %c0_i32_0 = arith.constant 0 : i32
    %c0_i32_1 = arith.constant 0 : i32
    return %c0_i32, %c0_i32_0 : i32, i32
  }
  func.func @transform_2(%arg0: i32) -> (i32, i32) {
    %c0_i32 = arith.constant 0 : i32
    %c0_i32_0 = arith.constant 0 : i32
    %c0_i32_1 = arith.constant 0 : i32
    return %c0_i32, %c0_i32_0 : i32, i32
  }
  func.func @transform_3(%arg0: i32) -> (i32, i32) {
    %c0_i32 = arith.constant 0 : i32
    %c0_i32_0 = arith.constant 0 : i32
    %c0_i32_1 = arith.constant 0 : i32
    return %c0_i32, %c0_i32_0 : i32, i32
  }
  func.func @transform_4(%arg0: i32) -> (i32, i32) {
    %c0_i32 = arith.constant 0 : i32
    %c0_i32_0 = arith.constant 0 : i32
    %c0_i32_1 = arith.constant 0 : i32
    return %c0_i32, %c0_i32_0 : i32, i32
  }
  func.func @transform_5(%arg0: i32) -> (i32, i32) {
    %c0_i32 = arith.constant 0 : i32
    %c0_i32_0 = arith.constant 0 : i32
    %c0_i32_1 = arith.constant 0 : i32
    return %c0_i32, %c0_i32_0 : i32, i32
  }
  func.func @transform_6(%arg0: i32) -> i32 {
    %c0_i32 = arith.constant 0 : i32
    %c0_i32_0 = arith.constant 0 : i32
    return %c0_i32 : i32
  }
  func.func @transform_7(%arg0: i32) -> (i32, i32, i32) {
    %c0_i32 = arith.constant 0 : i32
    %c0_i32_0 = arith.constant 0 : i32
    %c0_i32_1 = arith.constant 0 : i32
    return %arg0, %c0_i32, %c0_i32_0 : i32, i32, i32
  }
}

</mosaic_0001>

<llo_original>
// kernel: tpu_custom_call.1
$region0: #{tpu_custom_call.1}
  #allocation0 [shape = 'u32[]', space=smem, size = 0x4, offset = 0x4, fixed_abs, tag = 'smem constant byte address 0x4 - core index']
  #allocation1 [shape = 'u32[72,128]{1,0:T(1,128)}', space=vmem, size = 0x9000, scoped, tag = 'internal scratch']
  #allocation2 [shape = 'f32[1]{0:T(128)S(6)}', space=smem, size = 0x200, scoped, tag = 'scoped memory for tpu_custom_call.1']
  %s0 = inlined_call_operand.hbm [shape: f32[2,32,256], index: 0, kind: input, shape index: {}]
  %s1 = inlined_call_operand.vmem [shape: f32[2,32], index: 1, kind: input, shape index: {}]
  %s2 = inlined_call_operand.vmem [shape: f32[2,1], index: 2, kind: input, shape index: {}]
  %s3 = inlined_call_operand.vmem [shape: f32[32,2], index: 3, kind: input, shape index: {}]
  %s4 = inlined_call_operand.vmem [shape: f32[32,1], index: 4, kind: input, shape index: {}]
  %s5 = inlined_call_operand.vmem [shape: f32[32,1], index: 5, kind: input, shape index: {}]
  %s6 = inlined_call_operand.<no memory space> [shape: f32[1], index: 6, kind: input, shape index: {}]
  %s7 = inlined_call_operand.hbm [shape: f32[2,32,256], index: 7, kind: output, shape index: {}]
  %s8 = sld [smem:[#allocation0]]
  $region65: #{tpu_custom_call.1} parent=0
    _
  %s10 = ssub.s32 1, %s8
  %s11 = scalar_select 0, %s10, %s8
  %12 = sst [smem:[#allocation2]] %s6
  $region1: #{tpu_custom_call.1} parent=0
    #allocation3 [shape = 'u8[65536]{0}', space=vmem, size = 0x10000, scoped, tag = 'input window, operand 0']
    #allocation4 [shape = 's32[2]{0}', space=sflag, size = 0x8, scoped, tag = 'scoped memory for tpu_custom_call.1']
    #allocation5 [shape = 's32[2]{0}', space=sflag, size = 0x8, scoped, tag = 'scoped memory for tpu_custom_call.1']
    #allocation6 [shape = 'u8[65536]{0}', space=vmem, size = 0x10000, scoped, tag = 'output window, operand 0']
    %13 = vsyncpa [#allocation4], 0
    %s14 = scalar_lea.sflag [#allocation4], 1
    %15 = vsyncpa %s14, 0
    %16 = vsyncpa [#allocation5], 0
    %s17 = scalar_lea.sflag [#allocation5], 1
    %18 = vsyncpa %s17, 0
    loop: start=0, step=1, limit=4
    $region2: #{tpu_custom_call.1} parent=1 // loop_pre_header
      _
    $region3: #{tpu_custom_call.1} parent=1 // loop_header
      %s20 = sphi 0, %s24
      %p21 = scmp.ge.s32.totalorder %s20, 4
      %s30 = sphi 0, %s32
      %s33 = sphi 0, %s30
      %s34 = sphi 0, %s33
      %s50 = sphi 0, %s34
      %s54 = sphi 0, %s54
      %s56 = sphi 0, %s54
      %s57 = sphi 0, %s56
      %s71 = sphi 0, %s57
      %s75 = sphi 0, %s75
      %s77 = sphi 0, %s75
      %s78 = sphi 0, %s77
      %s92 = sphi 0, %s78
      %s96 = sphi 0, %s96
      %s98 = sphi 0, %s96
      %s99 = sphi 0, %s98
      %s113 = sphi 0, %s99
      %s117 = sphi 0, %s117
      %s119 = sphi 0, %s117
      %s120 = sphi 0, %s119
      %s134 = sphi 0, %s120
      %s138 = sphi 0, %s138
      %s140 = sphi 0, %s138
      %s141 = sphi 0, %s140
      %s155 = sphi 0, %s141
      %s159 = sphi 0, %s159
      %s161 = sphi 0, %s159
      %s162 = sphi 0, %s161
      %s176 = sphi 0, %s162
      %s182 = sphi 0, %s184
      %s185 = sphi 0, %s182
      %s186 = sphi 0, %s185
      %s202 = sphi 0, %s186
    $region4: #{tpu_custom_call.1} parent=1 // loop_header_branch
      %23 = sbr.rel (%p21) target = $region8
    $region5: #{tpu_custom_call.1} parent=1 // loop_body
      %s25 = ssub.s32 %s20, 1
      %s26 = ssub.s32 %s20, 2
      %s27 = sadd.s32 %s20, 1
      %s28 = ssub.s32 %s20, %s27
      %p29 = scmp.eq.s32.totalorder %s28, 0
      %s31 = sadd.s32 %s30, 1
      %s32 = scalar_select %p29, %s30, %s31
      %p35 = pneg %p29
      %p36 = scmp.eq.s32.totalorder %s20, 1
      %p37 = por %p35, %p36
      %p38 = scmp.ne.s32.totalorder %s30, %s33
      %p39 = scmp.eq.s32.totalorder %s20, 0
      %p40 = por %p38, %p39
      %p41 = scmp.ne.s32.totalorder %s30, %s33
      %p42 = scmp.eq.s32.totalorder %s25, 1
      %p43 = por %p41, %p42
      %p44 = scmp.ne.s32.totalorder %s33, %s34
      %p45 = scmp.eq.s32.totalorder %s25, 0
      %p46 = por %p44, %p45
      %p47 = scmp.ne.s32.totalorder %s33, %s34
      %p48 = scmp.eq.s32.totalorder %s26, 1
      %p49 = por %p47, %p48
      %p51 = scmp.ne.s32.totalorder %s34, %s50
      %p52 = scmp.eq.s32.totalorder %s26, 0
      %p53 = por %p51, %p52
      %s55 = sadd.s32 %s54, 1
      %p58 = scmp.eq.s32.totalorder %s20, 1
      %p59 = scmp.ne.s32.totalorder %s54, %s56
      %p60 = scmp.eq.s32.totalorder %s20, 0
      %p61 = por %p59, %p60
      %p62 = scmp.ne.s32.totalorder %s54, %s56
      %p63 = scmp.eq.s32.totalorder %s25, 1
      %p64 = por %p62, %p63
      %p65 = scmp.ne.s32.totalorder %s56, %s57
      %p66 = scmp.eq.s32.totalorder %s25, 0
      %p67 = por %p65, %p66
      %p68 = scmp.ne.s32.totalorder %s56, %s57
      %p69 = scmp.eq.s32.totalorder %s26, 1
      %p70 = por %p68, %p69
      %p72 = scmp.ne.s32.totalorder %s57, %s71
      %p73 = scmp.eq.s32.totalorder %s26, 0
      %p74 = por %p72, %p73
      %s76 = sadd.s32 %s75, 1
      %p79 = scmp.eq.s32.totalorder %s20, 1
      %p80 = scmp.ne.s32.totalorder %s75, %s77
      %p81 = scmp.eq.s32.totalorder %s20, 0
      %p82 = por %p80, %p81
      %p83 = scmp.ne.s32.totalorder %s75, %s77
      %p84 = scmp.eq.s32.totalorder %s25, 1
      %p85 = por %p83, %p84
      %p86 = scmp.ne.s32.totalorder %s77, %s78
      %p87 = scmp.eq.s32.totalorder %s25, 0
      %p88 = por %p86, %p87
      %p89 = scmp.ne.s32.totalorder %s77, %s78
      %p90 = scmp.eq.s32.totalorder %s26, 1
      %p91 = por %p89, %p90
      %p93 = scmp.ne.s32.totalorder %s78, %s92
      %p94 = scmp.eq.s32.totalorder %s26, 0
      %p95 = por %p93, %p94
      %s97 = sadd.s32 %s96, 1
      %p100 = scmp.eq.s32.totalorder %s20, 1
      %p101 = scmp.ne.s32.totalorder %s96, %s98
      %p102 = scmp.eq.s32.totalorder %s20, 0
      %p103 = por %p101, %p102
      %p104 = scmp.ne.s32.totalorder %s96, %s98
      %p105 = scmp.eq.s32.totalorder %s25, 1
      %p106 = por %p104, %p105
      %p107 = scmp.ne.s32.totalorder %s98, %s99
      %p108 = scmp.eq.s32.totalorder %s25, 0
      %p109 = por %p107, %p108
      %p110 = scmp.ne.s32.totalorder %s98, %s99
      %p111 = scmp.eq.s32.totalorder %s26, 1
      %p112 = por %p110, %p111
      %p114 = scmp.ne.s32.totalorder %s99, %s113
      %p115 = scmp.eq.s32.totalorder %s26, 0
      %p116 = por %p114, %p115
      %s118 = sadd.s32 %s117, 1
      %p121 = scmp.eq.s32.totalorder %s20, 1
      %p122 = scmp.ne.s32.totalorder %s117, %s119
      %p123 = scmp.eq.s32.totalorder %s20, 0
      %p124 = por %p122, %p123
      %p125 = scmp.ne.s32.totalorder %s117, %s119
      %p126 = scmp.eq.s32.totalorder %s25, 1
      %p127 = por %p125, %p126
      %p128 = scmp.ne.s32.totalorder %s119, %s120
      %p129 = scmp.eq.s32.totalorder %s25, 0
      %p130 = por %p128, %p129
      %p131 = scmp.ne.s32.totalorder %s119, %s120
      %p132 = scmp.eq.s32.totalorder %s26, 1
      %p133 = por %p131, %p132
      %p135 = scmp.ne.s32.totalorder %s120, %s134
      %p136 = scmp.eq.s32.totalorder %s26, 0
      %p137 = por %p135, %p136
      %s139 = sadd.s32 %s138, 1
      %p142 = scmp.eq.s32.totalorder %s20, 1
      %p143 = scmp.ne.s32.totalorder %s138, %s140
      %p144 = scmp.eq.s32.totalorder %s20, 0
      %p145 = por %p143, %p144
      %p146 = scmp.ne.s32.totalorder %s138, %s140
      %p147 = scmp.eq.s32.totalorder %s25, 1
      %p148 = por %p146, %p147
      %p149 = scmp.ne.s32.totalorder %s140, %s141
      %p150 = scmp.eq.s32.totalorder %s25, 0
      %p151 = por %p149, %p150
      %p152 = scmp.ne.s32.totalorder %s140, %s141
      %p153 = scmp.eq.s32.totalorder %s26, 1
      %p154 = por %p152, %p153
      %p156 = scmp.ne.s32.totalorder %s141, %s155
      %p157 = scmp.eq.s32.totalorder %s26, 0
      %p158 = por %p156, %p157
      %s160 = sadd.s32 %s159, 1
      %p163 = scmp.eq.s32.totalorder %s20, 1
      %p164 = scmp.ne.s32.totalorder %s159, %s161
      %p165 = scmp.eq.s32.totalorder %s20, 0
      %p166 = por %p164, %p165
      %p167 = scmp.ne.s32.totalorder %s159, %s161
      %p168 = scmp.eq.s32.totalorder %s25, 1
      %p169 = por %p167, %p168
      %p170 = scmp.ne.s32.totalorder %s161, %s162
      %p171 = scmp.eq.s32.totalorder %s25, 0
      %p172 = por %p170, %p171
      %p173 = scmp.ne.s32.totalorder %s161, %s162
      %p174 = scmp.eq.s32.totalorder %s26, 1
      %p175 = por %p173, %p174
      %p177 = scmp.ne.s32.totalorder %s162, %s176
      %p178 = scmp.eq.s32.totalorder %s26, 0
      %p179 = por %p177, %p178
      %s180 = ssub.s32 %s20, %s27
      %p181 = scmp.eq.s32.totalorder %s180, 0
      %s183 = sadd.s32 %s182, 1
      %s184 = scalar_select %p181, %s182, %s183
      %p187 = pneg %p181
      %p188 = scmp.eq.s32.totalorder %s20, 1
      %p189 = por %p187, %p188
      %p190 = scmp.ne.s32.totalorder %s182, %s185
      %p191 = scmp.eq.s32.totalorder %s20, 0
      %p192 = por %p190, %p191
      %p193 = scmp.ne.s32.totalorder %s182, %s185
      %p194 = scmp.eq.s32.totalorder %s25, 1
      %p195 = por %p193, %p194
      %p196 = scmp.ne.s32.totalorder %s185, %s186
      %p197 = scmp.eq.s32.totalorder %s25, 0
      %p198 = por %p196, %p197
      %p199 = scmp.ne.s32.totalorder %s185, %s186
      %p200 = scmp.eq.s32.totalorder %s26, 1
      %p201 = por %p199, %p200
      %p203 = scmp.ne.s32.totalorder %s186, %s202
      %p204 = scmp.eq.s32.totalorder %s26, 0
      %p205 = por %p203, %p204
      %p206 = scmp.le.s32.totalorder 1, %s20
      %p207 = scmp.lt.s32.totalorder %s20, 3
      %p208 = pnand %p206, %p207
      %p209 = pneg %p208
      // Predicated region
      $region9: #{tpu_custom_call.1} parent=5 // pred_check
        _
      $region10: #{tpu_custom_call.1} parent=5 // pred_check_branch
        %211 = sbr.rel (%p208) target = $region12
      $region11: #{tpu_custom_call.1} parent=5 // pred_region
        %s212 = ssub.s32 %s20, 1
        // Predicated region
        $region13: #{tpu_custom_call.1} parent=11 // pred_check
          %p213 = pneg %p67
        $region14: #{tpu_custom_call.1} parent=11 // pred_check_branch
          %215 = sbr.rel (%p213) target = $region16
        $region15: #{tpu_custom_call.1} parent=11 // pred_region
          _
        $region16: #{tpu_custom_call.1} parent=11 // pred_fallthru
          _
        // Predicated region
        $region17: #{tpu_custom_call.1} parent=11 // pred_check
          %p216 = pneg %p88
        $region18: #{tpu_custom_call.1} parent=11 // pred_check_branch
          %218 = sbr.rel (%p216) target = $region20
        $region19: #{tpu_custom_call.1} parent=11 // pred_region
          _
        $region20: #{tpu_custom_call.1} parent=11 // pred_fallthru
          _
        // Predicated region
        $region21: #{tpu_custom_call.1} parent=11 // pred_check
          %p219 = pneg %p109
        $region22: #{tpu_custom_call.1} parent=11 // pred_check_branch
          %221 = sbr.rel (%p219) target = $region24
        $region23: #{tpu_custom_call.1} parent=11 // pred_region
          _
        $region24: #{tpu_custom_call.1} parent=11 // pred_fallthru
          _
        // Predicated region
        $region25: #{tpu_custom_call.1} parent=11 // pred_check
          %p222 = pneg %p130
        $region26: #{tpu_custom_call.1} parent=11 // pred_check_branch
          %224 = sbr.rel (%p222) target = $region28
        $region27: #{tpu_custom_call.1} parent=11 // pred_region
          _
        $region28: #{tpu_custom_call.1} parent=11 // pred_fallthru
          _
        // Predicated region
        $region29: #{tpu_custom_call.1} parent=11 // pred_check
          %p225 = pneg %p151
        $region30: #{tpu_custom_call.1} parent=11 // pred_check_branch
          %227 = sbr.rel (%p225) target = $region32
        $region31: #{tpu_custom_call.1} parent=11 // pred_region
          _
        $region32: #{tpu_custom_call.1} parent=11 // pred_fallthru
          _
        // Predicated region
        $region33: #{tpu_custom_call.1} parent=11 // pred_check
          %p228 = pneg %p172
        $region34: #{tpu_custom_call.1} parent=11 // pred_check_branch
          %230 = sbr.rel (%p228) target = $region36
        $region35: #{tpu_custom_call.1} parent=11 // pred_region
          _
        $region36: #{tpu_custom_call.1} parent=11 // pred_fallthru
          _
      $region12: #{tpu_custom_call.1} parent=5 // pred_fallthru
        _
      %p231 = scmp.lt.s32.totalorder %s20, 2
      // Predicated region
      $region37: #{tpu_custom_call.1} parent=5 // pred_check
        %p232 = pneg %p231
      $region38: #{tpu_custom_call.1} parent=5 // pred_check_branch
        %234 = sbr.rel (%p232) target = $region40
      $region39: #{tpu_custom_call.1} parent=5 // pred_region
        // Predicated region
        $region41: #{tpu_custom_call.1} parent=39 // pred_check
          %p235 = pneg %p40
        $region42: #{tpu_custom_call.1} parent=39 // pred_check_branch
          %237 = sbr.rel (%p235) target = $region44
        $region43: #{tpu_custom_call.1} parent=39 // pred_region
          %s238 = sand.u32 %s30, 1
          %s239 = scalar_lea.sflag [#allocation4], %s238
          %s240 = sand.u32 %s30, 1
          %s241 = smul.addr %s240, 64
          %s242 = scalar_lea.vmem [#allocation3], %s241
          %244 = vsyncadd %s239, 0
          %s245 = smul.addr %s20, 8
          %s246 = smul.addr %s245, 8
          %s247 = scalar_lea.hbm %s0, %s246
          %s248 = sshll.u32 %s247, 4
          %s249 = int_to_ptr.hbm [resolvable:$true] %s248
          %s250 = sshll.u32 %s242, 4
          %s251 = int_to_ptr.vmem [resolvable:$true] %s250
          %256 = dma.hbm_to_vmem [thread:$0]  %s249, 1024, %s251, %s239, 256, 256, 16
        $region44: #{tpu_custom_call.1} parent=39 // pred_fallthru
          _
      $region40: #{tpu_custom_call.1} parent=5 // pred_fallthru
        _
      %p257 = scmp.le.s32.totalorder 1, %s20
      %p258 = scmp.lt.s32.totalorder %s20, 3
      %p259 = pnand %p257, %p258
      %p260 = pneg %p259
      // Predicated region
      $region45: #{tpu_custom_call.1} parent=5 // pred_check
        _
      $region46: #{tpu_custom_call.1} parent=5 // pred_check_branch
        %262 = sbr.rel (%p259) target = $region48
      $region47: #{tpu_custom_call.1} parent=5 // pred_region
        %s263 = ssub.s32 %s20, 1
        %s264 = sand.u32 %s33, 1
        %s265 = scalar_lea.sflag [#allocation4], %s264
        %s266 = sand.u32 %s33, 1
        %s267 = smul.addr %s266, 64
        %s268 = scalar_lea.vmem [#allocation3], %s267
        // Predicated region
        $region49: #{tpu_custom_call.1} parent=47 // pred_check
          %p269 = pneg %p46
        $region50: #{tpu_custom_call.1} parent=47 // pred_check_branch
          %271 = sbr.rel (%p269) target = $region52
        $region51: #{tpu_custom_call.1} parent=47 // pred_region
          %273 = dma.done %s265, 1024
        $region52: #{tpu_custom_call.1} parent=47 // pred_fallthru
          _
        %s274 = sand.u32 %s33, 1
        %s275 = scalar_lea.sflag [#allocation4], %s274
        %s276 = sand.u32 %s33, 1
        %s277 = smul.addr %s276, 64
        %s278 = scalar_lea.vmem [#allocation3], %s277
        %p279 = pneg %p46
        %p280 = pneg %p43
        %p281 = pneg %p67
        %p282 = pneg %p64
        %p283 = pneg %p88
        %p284 = pneg %p85
        %p285 = pneg %p109
        %p286 = pneg %p106
        %p287 = pneg %p130
        %p288 = pneg %p127
        %p289 = pneg %p151
        %p290 = pneg %p148
        %p291 = pneg %p172
        %p292 = pneg %p169
        %p293 = pneg %p198
        %p294 = pneg %p195
        %s295 = sand.u32 %s185, 1
        %s296 = scalar_lea.sflag [#allocation5], %s295
        %s297 = sand.u32 %s185, 1
        %s298 = smul.addr %s297, 64
        %s299 = scalar_lea.vmem [#allocation6], %s298
        %v300 = vld [vmem:[%s268] sm:$0xff]
        %v301 = vld [vmem:[%s268 + $0x8] sm:$0xff]
        %v302 = vld [vmem:[%s268 + $0x10] sm:$0xff]
        %v303 = vld [vmem:[%s268 + $0x18] sm:$0xff]
        %v304 = vld [vmem:[%s268 + $0x20] sm:$0xff]
        %v305 = vld [vmem:[%s268 + $0x28] sm:$0xff]
        %v306 = vld [vmem:[%s268 + $0x30] sm:$0xff]
        %v307 = vld [vmem:[%s268 + $0x38] sm:$0xff]
        %v308 = vadd.f32 %v300, %v301
        %309 = vadd.xlane.f32.xlu0 %v308
        %v310 = vpop.xlane.xlu0 %309
        %v311 = vadd.f32 %v302, %v303
        %312 = vadd.xlane.f32.xlu0 %v311
        %v313 = vpop.xlane.xlu0 %312
        %v314 = vadd.f32 %v304, %v305
        %315 = vadd.xlane.f32.xlu0 %v314
        %v316 = vpop.xlane.xlu0 %315
        %v317 = vadd.f32 %v306, %v307
        %318 = vadd.xlane.f32.xlu0 %v317
        %v319 = vpop.xlane.xlu0 %318
        %v320 = vmul.f32 %v310, 0.00390625
        %v321 = vmul.f32 %v313, 0.00390625
        %v322 = vmul.f32 %v316, 0.00390625
        %v323 = vmul.f32 %v319, 0.00390625
        %v324 = vld [vmem:[%s1] sm:$0x3]
        %v325 = vld [vmem:[%s2] sm:$0x3]
        %vm326 = vcmask 261120
        %v328 = vsel %vm326, %v324, 0
        %330 = vmatpush.msra.mxu0 0.0
        %331 = vmatpush.msra.mxu0 0.0
        %332 = vmatpush.msra.mxu0 0.0
        %333 = vmatpush.msra.mxu0 0.0
        %334 = vmatpush.msra.mxu0 0.0
        %335 = vmatpush.msra.mxu0 0.0
        %336 = vmatpush.msra.mxu0 0.0
        %337 = vmatpush.msra.mxu0 0.0
        %338 = vmatpush.msra.mxu0 0.0
        %339 = vmatpush.msra.mxu0 0.0
        %340 = vmatpush.msra.mxu0 0.0
        %341 = vmatpush.msra.mxu0 0.0
        %342 = vmatpush.msra.mxu0 %v323
        %343 = vmatpush.msra.mxu0 %v322
        %344 = vmatpush.msra.mxu0 %v321
        %345 = vmatpush.msra.mxu0 %v320
        %346 = vmatmul.f32.gmra.mxu0 %v328
        %v347 = vpop.f32.mrf.mxu0
        %v348 = vadd.f32 %v325, %v347
        %349 = vdwg.mxu0
        %v350 = vmax.f32 %v348, 0.0
        %v351 = vld [vmem:[%s3] sm:$0xff]
        %v352 = vld [vmem:[%s3 + $0x8] sm:$0xff]
        %v353 = vld [vmem:[%s3 + $0x10] sm:$0xff]
        %v354 = vld [vmem:[%s3 + $0x18] sm:$0xff]
        %v355 = vld [vmem:[%s4] sm:$0xff]
        %v356 = vld [vmem:[%s4 + $0x8] sm:$0xff]
        %v357 = vld [vmem:[%s4 + $0x10] sm:$0xff]
        %v358 = vld [vmem:[%s4 + $0x18] sm:$0xff]
        %vm359 = vcmask 15360
        %v361 = vsel %vm359, %v351, 0
        %v364 = vsel %vm359, %v352, 0
        %v367 = vsel %vm359, %v353, 0
        %v370 = vsel %vm359, %v354, 0
        %vm372 = vcmask 1041408
        %v374 = vsel %vm372, %v350, 0
        %376 = vmatpush.msra.mxu0 0.0
        %377 = vmatpush.msra.mxu0 0.0
        %378 = vmatpush.msra.mxu0 0.0
        %379 = vmatpush.msra.mxu0 0.0
        %380 = vmatpush.msra.mxu0 0.0
        %381 = vmatpush.msra.mxu0 0.0
        %382 = vmatpush.msra.mxu0 0.0
        %383 = vmatpush.msra.mxu0 0.0
        %384 = vmatpush.msra.mxu0 0.0
        %385 = vmatpush.msra.mxu0 0.0
        %386 = vmatpush.msra.mxu0 0.0
        %387 = vmatpush.msra.mxu0 0.0
        %388 = vmatpush.msra.mxu0 0.0
        %389 = vmatpush.msra.mxu0 0.0
        %390 = vmatpush.msra.mxu0 0.0
        %391 = vmatpush.msra.mxu0 %v374
        %392 = vmatmul.f32.gmra.mxu0 %v361
        %v393 = vpop.f32.mrf.mxu0
        %v394 = vadd.f32 %v355, %v393
        %395 = vmatmul.f32.gmra.mxu0 %v364
        %v396 = vpop.f32.mrf.mxu0
        %v397 = vadd.f32 %v356, %v396
        %398 = vmatmul.f32.gmra.mxu0 %v367
        %v399 = vpop.f32.mrf.mxu0
        %v400 = vadd.f32 %v357, %v399
        %401 = vmatmul.f32.gmra.mxu0 %v370
        %v402 = vpop.f32.mrf.mxu0
        %v403 = vadd.f32 %v358, %v402
        %404 = vdwg.mxu0
        %v405 = vxor.u32 %v394, 2147483648
        %v406 = vxor.u32 %v397, 2147483648
        %v407 = vxor.u32 %v400, 2147483648
        %v408 = vxor.u32 %v403, 2147483648
        %v409 = vmul.f32 %v405, 1.442695
        %v410 = vpow.pop %v409
        %v411 = vmul.f32 %v406, 1.442695
        %v412 = vpow.pop %v411
        %v413 = vmul.f32 %v407, 1.442695
        %v414 = vpow.pop %v413
        %v415 = vmul.f32 %v408, 1.442695
        %v416 = vpow.pop %v415
        %v417 = vadd.f32 %v410, 1.0
        %v418 = vadd.f32 %v412, 1.0
        %v419 = vadd.f32 %v414, 1.0
        %v420 = vadd.f32 %v416, 1.0
        %v421 = vrcp.pop %v417
        %v422 = vmul.f32 %v417, %v421
        %v423 = vsub.f32 1.0, %v422
        %v424 = vmul.f32 %v421, %v423
        %v425 = vadd.f32 %v421, %v424
        %vm426 = vweird.f32 %v417
        %vm427 = vweird.f32 %v421
        %vm428 = vmor %vm426, %vm427
        %v429 = vsel %vm428, %v421, %v425
        %v430 = vand.u32 2147483647, %v417
        %vm431 = vcmp.eq.f32.partialorder %v430, 8.507059e+37
        %v432 = vand.u32 %v417, 2147483648
        %v433 = vor.u32 1.1754944e-38, %v432
        %v434 = vsel %vm431, %v433, %v429
        %v435 = vmul.f32 1.0, %v434
        %v436 = vrcp.pop %v418
        %v437 = vmul.f32 %v418, %v436
        %v438 = vsub.f32 1.0, %v437
        %v439 = vmul.f32 %v436, %v438
        %v440 = vadd.f32 %v436, %v439
        %vm441 = vweird.f32 %v418
        %vm442 = vweird.f32 %v436
        %vm443 = vmor %vm441, %vm442
        %v444 = vsel %vm443, %v436, %v440
        %v445 = vand.u32 2147483647, %v418
        %vm446 = vcmp.eq.f32.partialorder %v445, 8.507059e+37
        %v447 = vand.u32 %v418, 2147483648
        %v448 = vor.u32 1.1754944e-38, %v447
        %v449 = vsel %vm446, %v448, %v444
        %v450 = vmul.f32 1.0, %v449
        %v451 = vrcp.pop %v419
        %v452 = vmul.f32 %v419, %v451
        %v453 = vsub.f32 1.0, %v452
        %v454 = vmul.f32 %v451, %v453
        %v455 = vadd.f32 %v451, %v454
        %vm456 = vweird.f32 %v419
        %vm457 = vweird.f32 %v451
        %vm458 = vmor %vm456, %vm457
        %v459 = vsel %vm458, %v451, %v455
        %v460 = vand.u32 2147483647, %v419
        %vm461 = vcmp.eq.f32.partialorder %v460, 8.507059e+37
        %v462 = vand.u32 %v419, 2147483648
        %v463 = vor.u32 1.1754944e-38, %v462
        %v464 = vsel %vm461, %v463, %v459
        %v465 = vmul.f32 1.0, %v464
        %v466 = vrcp.pop %v420
        %v467 = vmul.f32 %v420, %v466
        %v468 = vsub.f32 1.0, %v467
        %v469 = vmul.f32 %v466, %v468
        %v470 = vadd.f32 %v466, %v469
        %vm471 = vweird.f32 %v420
        %vm472 = vweird.f32 %v466
        %vm473 = vmor %vm471, %vm472
        %v474 = vsel %vm473, %v466, %v470
        %v475 = vand.u32 2147483647, %v420
        %vm476 = vcmp.eq.f32.partialorder %v475, 8.507059e+37
        %v477 = vand.u32 %v420, 2147483648
        %v478 = vor.u32 1.1754944e-38, %v477
        %v479 = vsel %vm476, %v478, %v474
        %v480 = vmul.f32 1.0, %v479
        %v481 = vld [vmem:[%s5] sm:$0xff]
        %v482 = vld [vmem:[%s5 + $0x8] sm:$0xff]
        %v483 = vld [vmem:[%s5 + $0x10] sm:$0xff]
        %v484 = vld [vmem:[%s5 + $0x18] sm:$0xff]
        %486 = vset.pattern.permute.xlu0 0
        %487 = vperm.xlu0 %486, %v481
        %v488 = vpop.permute.xlu0 %487
        %491 = vset.pattern.permute.xlu0 0
        %492 = vperm.xlu0 %491, %v482
        %v493 = vpop.permute.xlu0 %492
        %496 = vset.pattern.permute.xlu0 0
        %497 = vperm.xlu0 %496, %v483
        %v498 = vpop.permute.xlu0 %497
        %501 = vset.pattern.permute.xlu0 0
        %502 = vperm.xlu0 %501, %v484
        %v503 = vpop.permute.xlu0 %502
        %v505 = vmul.f32 %v300, %v488
        %v506 = vmul.f32 %v301, %v488
        %v507 = vmul.f32 %v302, %v493
        %v508 = vmul.f32 %v303, %v493
        %v509 = vmul.f32 %v304, %v498
        %v510 = vmul.f32 %v305, %v498
        %v511 = vmul.f32 %v306, %v503
        %v512 = vmul.f32 %v307, %v503
        %v513 = vadd.f32 %v505, %v507
        %v514 = vadd.f32 %v513, %v509
        %v515 = vadd.f32 %v514, %v511
        %v516 = vrot.slane %v515, 4
        %v517 = vadd.f32 %v515, %v516
        %v518 = vrot.slane %v517, 2
        %v519 = vadd.f32 %v517, %v518
        %v520 = vrot.slane %v519, 1
        %v521 = vadd.f32 %v519, %v520
        %v522 = vadd.f32 %v506, %v508
        %v523 = vadd.f32 %v522, %v510
        %v524 = vadd.f32 %v523, %v512
        %v525 = vrot.slane %v524, 4
        %v526 = vadd.f32 %v524, %v525
        %v527 = vrot.slane %v526, 2
        %v528 = vadd.f32 %v526, %v527
        %v529 = vrot.slane %v528, 1
        %v530 = vadd.f32 %v528, %v529
        %s531 = sld [smem:[#allocation2]]
        %v532 = vstv %s531
        %v533 = vadd.f32 %v521, %v532
        %v534 = vadd.f32 %v530, %v532
        %v535 = vxor.u32 %v533, 2147483648
        %v536 = vxor.u32 %v534, 2147483648
        %v537 = vmul.f32 %v535, 1.442695
        %v538 = vpow.pop %v537
        %v539 = vmul.f32 %v536, 1.442695
        %v540 = vpow.pop %v539
        %v541 = vadd.f32 %v538, 1.0
        %v542 = vadd.f32 %v540, 1.0
        %v543 = vrcp.pop %v541
        %v544 = vmul.f32 %v541, %v543
        %v545 = vsub.f32 1.0, %v544
        %v546 = vmul.f32 %v543, %v545
        %v547 = vadd.f32 %v543, %v546
        %vm548 = vweird.f32 %v541
        %vm549 = vweird.f32 %v543
        %vm550 = vmor %vm548, %vm549
        %v551 = vsel %vm550, %v543, %v547
        %v552 = vand.u32 2147483647, %v541
        %vm553 = vcmp.eq.f32.partialorder %v552, 8.507059e+37
        %v554 = vand.u32 %v541, 2147483648
        %v555 = vor.u32 1.1754944e-38, %v554
        %v556 = vsel %vm553, %v555, %v551
        %v557 = vmul.f32 1.0, %v556
        %v558 = vrcp.pop %v542
        %v559 = vmul.f32 %v542, %v558
        %v560 = vsub.f32 1.0, %v559
        %v561 = vmul.f32 %v558, %v560
        %v562 = vadd.f32 %v558, %v561
        %vm563 = vweird.f32 %v542
        %vm564 = vweird.f32 %v558
        %vm565 = vmor %vm563, %vm564
        %v566 = vsel %vm565, %v558, %v562
        %v567 = vand.u32 2147483647, %v542
        %vm568 = vcmp.eq.f32.partialorder %v567, 8.507059e+37
        %v569 = vand.u32 %v542, 2147483648
        %v570 = vor.u32 1.1754944e-38, %v569
        %v571 = vsel %vm568, %v570, %v566
        %v572 = vmul.f32 1.0, %v571
        %574 = vset.pattern.permute.xlu0 0
        %575 = vperm.xlu0 %574, %v435
        %v576 = vpop.permute.xlu0 %575
        %579 = vset.pattern.permute.xlu0 0
        %580 = vperm.xlu0 %579, %v450
        %v581 = vpop.permute.xlu0 %580
        %584 = vset.pattern.permute.xlu0 0
        %585 = vperm.xlu0 %584, %v465
        %v586 = vpop.permute.xlu0 %585
        %589 = vset.pattern.permute.xlu0 0
        %590 = vperm.xlu0 %589, %v480
        %v591 = vpop.permute.xlu0 %590
        %v593 = vadd.f32 %v576, %v557
        %v594 = vadd.f32 %v576, %v572
        %v595 = vadd.f32 %v581, %v557
        %v596 = vadd.f32 %v581, %v572
        %v597 = vadd.f32 %v586, %v557
        %v598 = vadd.f32 %v586, %v572
        %v599 = vadd.f32 %v591, %v557
        %v600 = vadd.f32 %v591, %v572
        %v601 = vmul.f32 %v300, %v593
        %v602 = vmul.f32 %v301, %v594
        %v603 = vmul.f32 %v302, %v595
        %v604 = vmul.f32 %v303, %v596
        %v605 = vmul.f32 %v304, %v597
        %v606 = vmul.f32 %v305, %v598
        %v607 = vmul.f32 %v306, %v599
        %v608 = vmul.f32 %v307, %v600
        %609 = vst [vmem:[%s299] sm:$0xff] %v601
        %610 = vst [vmem:[%s299 + $0x8] sm:$0xff] %v602
        %611 = vst [vmem:[%s299 + $0x10] sm:$0xff] %v603
        %612 = vst [vmem:[%s299 + $0x18] sm:$0xff] %v604
        %613 = vst [vmem:[%s299 + $0x20] sm:$0xff] %v605
        %614 = vst [vmem:[%s299 + $0x28] sm:$0xff] %v606
        %615 = vst [vmem:[%s299 + $0x30] sm:$0xff] %v607
        %616 = vst [vmem:[%s299 + $0x38] sm:$0xff] %v608
        %s617 = sand.u32 %s185, 1
        %s618 = scalar_lea.sflag [#allocation5], %s617
        %s619 = sand.u32 %s185, 1
        %s620 = smul.addr %s619, 64
        %s621 = scalar_lea.vmem [#allocation6], %s620
        // Predicated region
        $region53: #{tpu_custom_call.1} parent=47 // pred_check
          %p622 = pneg %p195
        $region54: #{tpu_custom_call.1} parent=47 // pred_check_branch
          %624 = sbr.rel (%p622) target = $region56
        $region55: #{tpu_custom_call.1} parent=47 // pred_region
          %626 = vsyncadd %s618, 0
          %s627 = smul.addr %s25, 8
          %s628 = smul.addr %s627, 8
          %s629 = scalar_lea.hbm %s7, %s628
          %s630 = sshll.u32 %s621, 4
          %s631 = int_to_ptr.vmem [resolvable:$true] %s630
          %s632 = sshll.u32 %s629, 4
          %s633 = int_to_ptr.hbm [resolvable:$true] %s632
          %638 = dma.vmem_to_hbm [thread:$0]  %s631, 1024, %s633, %s618, 256, 256, 16
        $region56: #{tpu_custom_call.1} parent=47 // pred_fallthru
          _
      $region48: #{tpu_custom_call.1} parent=5 // pred_fallthru
        _
      %p639 = scmp.le.s32.totalorder 2, %s20
      // Predicated region
      $region57: #{tpu_custom_call.1} parent=5 // pred_check
        %p640 = pneg %p639
      $region58: #{tpu_custom_call.1} parent=5 // pred_check_branch
        %642 = sbr.rel (%p640) target = $region60
      $region59: #{tpu_custom_call.1} parent=5 // pred_region
        %s643 = ssub.s32 %s20, 2
        // Predicated region
        $region61: #{tpu_custom_call.1} parent=59 // pred_check
          %p644 = pneg %p201
        $region62: #{tpu_custom_call.1} parent=59 // pred_check_branch
          %646 = sbr.rel (%p644) target = $region64
        $region63: #{tpu_custom_call.1} parent=59 // pred_region
          %s647 = sand.u32 %s186, 1
          %s648 = scalar_lea.sflag [#allocation5], %s647
          %s649 = sand.u32 %s186, 1
          %s650 = smul.addr %s649, 64
          %s651 = scalar_lea.vmem [#allocation6], %s650
          %653 = dma.done %s648, 1024
        $region64: #{tpu_custom_call.1} parent=59 // pred_fallthru
          _
      $region60: #{tpu_custom_call.1} parent=5 // pred_fallthru
        _
    $region6: #{tpu_custom_call.1} parent=1 // loop_footer
      %s24 = sadd.s32 1, %s20
    $region7: #{tpu_custom_call.1} parent=1 // loop_footer_branch
      %19 = sbr.rel target = $region3
    $region8: #{tpu_custom_call.1} parent=1 // loop_exit
      _
    %654 = vsyncpa [#allocation4], 1
    %s655 = scalar_lea.sflag [#allocation4], 1
    %656 = vsyncpa %s655, 1
    %657 = vsyncpa [#allocation5], 1
    %s658 = scalar_lea.sflag [#allocation5], 1
    %659 = vsyncpa %s658, 1

</llo_original>
